<compile_context>
chip_gen: v6e
topology: v6e:2x2x1
jax: 0.10.0
libtpu: 0.0.40
codegen_flags: <defaults>
</compile_context>

<pallas_src>
import functools

import jax
import jax.numpy as jnp
from jax.experimental import pallas as pl
from jax.experimental.pallas import tpu as pltpu


def _round_up(x: int, m: int) -> int:
    return (x + m - 1) // m * m


def mae_decoder_kernel(x_ref, w1_ref, b1_ref, w2_ref, b2_ref, w3_ref, b3_ref, o_ref):
    """Three fused MXU matmuls with f32 accumulation; bias add + ReLU in f32."""
    compute_dtype = w1_ref.dtype
    x = x_ref[...]
    # Hoist bias loads once (broadcast over rows happens in the add).
    b1 = b1_ref[...]
    b2 = b2_ref[...]
    b3 = b3_ref[...]

    h = jnp.dot(x, w1_ref[...], preferred_element_type=jnp.float32) + b1
    h = jnp.maximum(h, 0.0)
    h = jnp.dot(h.astype(compute_dtype), w2_ref[...],
                preferred_element_type=jnp.float32) + b2
    h = jnp.maximum(h, 0.0)
    out = jnp.dot(h.astype(compute_dtype), w3_ref[...],
                  preferred_element_type=jnp.float32) + b3
    o_ref[...] = out.astype(o_ref.dtype)


def mae_decoder(x, w1, b1, w2, b2, w3, b3, *, block_b=512,
                compute_dtype=jnp.bfloat16):
    """x: [B, input_dim]; weights stored [in, out] (i.e. PyTorch weight.T); biases 1-D."""
    out_dtype = x.dtype
    B, input_dim = x.shape
    hidden_dim = w1.shape[1]
    output_dim = w3.shape[1]

    # Lane-dense padded feature dims (multiples of 128).
    H = _round_up(hidden_dim, 128)
    O = _round_up(output_dim, 128)

    cd = jnp.dtype(compute_dtype).itemsize
    od = jnp.dtype(out_dtype).itemsize

    # Batch tile: clamp to padded batch, keep sublane (8) alignment, shrink if the
    # per-step working set would exceed a conservative VMEM budget (v7x scoped = 32 MiB).
    def vmem_estimate(bb):
        tiles = 2 * bb * input_dim * cd + 2 * bb * O * od          # double-buffered x / out
        params = (input_dim * H + H * H + H * O) * cd + (2 * H + O) * 4  # resident, single copy
        interm = 2 * bb * H * 4                                     # f32 hidden activations
        return tiles + params + interm

    VMEM_BUDGET = 32 * 1024 * 1024
    block_b = _round_up(max(8, min(block_b, _round_up(B, 8))), 8)
    while vmem_estimate(block_b) > VMEM_BUDGET and block_b > 8:
        block_b = _round_up(max(8, block_b // 2), 8)

    B_pad = _round_up(B, block_b)
    grid = (B_pad // block_b,)
    # NOTE(v7x): for large B this grid has >= 2 parallel steps so both TensorCores get
    # work; for small B we deliberately collapse to one VMEM-resident step.

    # Pad parameters (zero padding keeps the math exact) and cast matmul operands.
    w1p = jnp.pad(w1, ((0, 0), (0, H - hidden_dim))).astype(compute_dtype)
    w2p = jnp.pad(w2, ((0, H - hidden_dim), (0, H - hidden_dim))).astype(compute_dtype)
    w3p = jnp.pad(w3, ((0, H - hidden_dim), (0, O - output_dim))).astype(compute_dtype)
    b1p = jnp.pad(b1.reshape(1, -1).astype(jnp.float32), ((0, 0), (0, H - hidden_dim)))
    b2p = jnp.pad(b2.reshape(1, -1).astype(jnp.float32), ((0, 0), (0, H - hidden_dim)))
    b3p = jnp.pad(b3.reshape(1, -1).astype(jnp.float32), ((0, 0), (0, O - output_dim)))
    xp = jnp.pad(x, ((0, B_pad - B), (0, 0))).astype(compute_dtype)

    vmem_limit = int(min(max(2 * vmem_estimate(block_b), 16 * 1024 * 1024),
                         48 * 1024 * 1024))

    # Weights / biases: whole-array VMEM residents (no per-step DMA, single buffer).
    resident = pl.BlockSpec(memory_space=pltpu.MemorySpace.VMEM)

    out_padded = pl.pallas_call(
        mae_decoder_kernel,
        out_shape=jax.ShapeDtypeStruct((B_pad, O), out_dtype),
        grid=grid,
        in_specs=[
            pl.BlockSpec((block_b, input_dim), lambda i: (i, 0)),  # x tile
            resident,  # W1
            resident,  # b1
            resident,  # W2
            resident,  # b2
            resident,  # W3
            resident,  # b3
        ],
        out_specs=pl.BlockSpec((block_b, O), lambda i: (i, 0)),
        compiler_params=pltpu.CompilerParams(
            dimension_semantics=("parallel",),
            vmem_limit_bytes=vmem_limit,
        ),
    )(xp, w1p, b1p, w2p, b2p, w3p, b3p)

    return out_padded[:B, :output_dim]


def reference_mlp(x, w1, b1, w2, b2, w3, b3, compute_dtype=jnp.float32):
    cdt = compute_dtype
    h = jnp.dot(x.astype(cdt), w1.astype(cdt), preferred_element_type=jnp.float32) + b1
    h = jnp.maximum(h, 0.0)
    h = jnp.dot(h.astype(cdt), w2.astype(cdt), preferred_element_type=jnp.float32) + b2
    h = jnp.maximum(h, 0.0)
    return jnp.dot(h.astype(cdt), w3.astype(cdt), preferred_element_type=jnp.float32) + b3


if __name__ == "__main__":
    # Small shapes consistent with MAEDecoder(input_dim, hidden_dim, output_dim).
    B = 128
    input_dim, hidden_dim, output_dim = 32, 64, 48

    key = jax.random.PRNGKey(0)
    kx, k1, k2, k3, kb1, kb2, kb3 = jax.random.split(key, 7)

    x = jax.random.normal(kx, (B, input_dim), dtype=jnp.float32)

    # Deterministic synthetic parameters (Kaiming-ish scaling), stored [in, out].
    w1 = jax.random.normal(k1, (input_dim, hidden_dim), dtype=jnp.float32) / jnp.sqrt(input_dim)
    b1 = jax.random.normal(kb1, (hidden_dim,), dtype=jnp.float32) * 0.01
    w2 = jax.random.normal(k2, (hidden_dim, hidden_dim), dtype=jnp.float32) / jnp.sqrt(hidden_dim)
    b2 = jax.random.normal(kb2, (hidden_dim,), dtype=jnp.float32) * 0.01
    w3 = jax.random.normal(k3, (hidden_dim, output_dim), dtype=jnp.float32) / jnp.sqrt(hidden_dim)
    b3 = jax.random.normal(kb3, (output_dim,), dtype=jnp.float32) * 0.01

    out = mae_decoder(x, w1, b1, w2, b2, w3, b3)
    out = jax.block_until_ready(out)
    assert out.shape == (B, output_dim)

    # Dtype-matched reference (bf16 matmul inputs, f32 accumulation) -> tight check.
    ref_bf16 = reference_mlp(x, w1, b1, w2, b2, w3, b3, compute_dtype=jnp.bfloat16)
    assert jnp.allclose(out, ref_bf16, atol=5e-3, rtol=5e-3), "mismatch vs bf16 reference"

    # Pure-f32 reference -> loose semantic check (bf16 quantization error only).
    ref_f32 = reference_mlp(x, w1, b1, w2, b2, w3, b3, compute_dtype=jnp.float32)
    assert jnp.allclose(out, ref_f32, atol=1e-1, rtol=1e-1), "mismatch vs f32 reference"

    print("KERNEL_OK")
</pallas_src>

<mosaic_0001>
module attributes {stable_mosaic.version = 11 : i64} {
  func.func @mae_decoder_kernel(%arg0: i32, %arg1: memref<128x32xbf16, #tpu.memory_space<vmem>>, %arg2: memref<32x128xbf16, #tpu.memory_space<vmem>>, %arg3: memref<1x128xf32, #tpu.memory_space<vmem>>, %arg4: memref<128x128xbf16, #tpu.memory_space<vmem>>, %arg5: memref<1x128xf32, #tpu.memory_space<vmem>>, %arg6: memref<128x128xbf16, #tpu.memory_space<vmem>>, %arg7: memref<1x128xf32, #tpu.memory_space<vmem>>, %arg8: memref<128x128xf32, #tpu.memory_space<vmem>>) attributes {dimension_semantics = [#tpu.dimension_semantics<parallel>], iteration_bounds = array<i64: 1>, scalar_prefetch = 0 : i64, scratch_operands = 0 : i64, tpu.core_type = #tpu.core_type<tc>, window_params = [{transform_indices = @transform_0, window_bounds = array<i64: 128, 32>}, {pipeline_mode = #tpu.pipeline_mode<synchronous>, transform_indices = @transform_1, window_bounds = array<i64: 32, 128>}, {pipeline_mode = #tpu.pipeline_mode<synchronous>, transform_indices = @transform_2, window_bounds = array<i64: 1, 128>}, {pipeline_mode = #tpu.pipeline_mode<synchronous>, transform_indices = @transform_3, window_bounds = array<i64: 128, 128>}, {pipeline_mode = #tpu.pipeline_mode<synchronous>, transform_indices = @transform_4, window_bounds = array<i64: 1, 128>}, {pipeline_mode = #tpu.pipeline_mode<synchronous>, transform_indices = @transform_5, window_bounds = array<i64: 128, 128>}, {pipeline_mode = #tpu.pipeline_mode<synchronous>, transform_indices = @transform_6, window_bounds = array<i64: 1, 128>}, {transform_indices = @transform_7, window_bounds = array<i64: 128, 128>}]} {
    %c0 = arith.constant 0 : index
    %c0_0 = arith.constant 0 : index
    %0 = vector.load %arg1[%c0, %c0_0] : memref<128x32xbf16, #tpu.memory_space<vmem>>, vector<128x32xbf16>
    %c0_1 = arith.constant 0 : index
    %c0_2 = arith.constant 0 : index
    %1 = vector.load %arg3[%c0_1, %c0_2] : memref<1x128xf32, #tpu.memory_space<vmem>>, vector<1x128xf32>
    %c0_3 = arith.constant 0 : index
    %c0_4 = arith.constant 0 : index
    %2 = vector.load %arg5[%c0_3, %c0_4] : memref<1x128xf32, #tpu.memory_space<vmem>>, vector<1x128xf32>
    %c0_5 = arith.constant 0 : index
    %c0_6 = arith.constant 0 : index
    %3 = vector.load %arg7[%c0_5, %c0_6] : memref<1x128xf32, #tpu.memory_space<vmem>>, vector<1x128xf32>
    %c0_7 = arith.constant 0 : index
    %c0_8 = arith.constant 0 : index
    %4 = vector.load %arg2[%c0_7, %c0_8] : memref<32x128xbf16, #tpu.memory_space<vmem>>, vector<32x128xbf16>
    %cst = arith.constant dense<0.000000e+00> : vector<128x128xf32>
    %5 = tpu.matmul %0, %4, %cst {dimension_numbers = #tpu.dot_dimension_numbers<[1], [0], [0], [1], [0, 0, 1, 1], [], []>} : vector<128x32xbf16>, vector<32x128xbf16>, vector<128x128xf32> -> vector<128x128xf32>
    %6 = vector.broadcast %1 : vector<1x128xf32> to vector<128x128xf32>
    %7 = arith.addf %5, %6 : vector<128x128xf32>
    %cst_9 = arith.constant 0.000000e+00 : f32
    %8 = vector.broadcast %cst_9 : f32 to vector<128x128xf32>
    %9 = arith.maximumf %7, %8 : vector<128x128xf32>
    %10 = arith.truncf %9 : vector<128x128xf32> to vector<128x128xbf16>
    %c0_10 = arith.constant 0 : index
    %c0_11 = arith.constant 0 : index
    %11 = vector.load %arg4[%c0_10, %c0_11] : memref<128x128xbf16, #tpu.memory_space<vmem>>, vector<128x128xbf16>
    %cst_12 = arith.constant dense<0.000000e+00> : vector<128x128xf32>
    %12 = tpu.matmul %10, %11, %cst_12 {dimension_numbers = #tpu.dot_dimension_numbers<[1], [0], [0], [1], [0, 0, 1, 1], [], []>} : vector<128x128xbf16>, vector<128x128xbf16>, vector<128x128xf32> -> vector<128x128xf32>
    %13 = vector.broadcast %2 : vector<1x128xf32> to vector<128x128xf32>
    %14 = arith.addf %12, %13 : vector<128x128xf32>
    %cst_13 = arith.constant 0.000000e+00 : f32
    %15 = vector.broadcast %cst_13 : f32 to vector<128x128xf32>
    %16 = arith.maximumf %14, %15 : vector<128x128xf32>
    %17 = arith.truncf %16 : vector<128x128xf32> to vector<128x128xbf16>
    %c0_14 = arith.constant 0 : index
    %c0_15 = arith.constant 0 : index
    %18 = vector.load %arg6[%c0_14, %c0_15] : memref<128x128xbf16, #tpu.memory_space<vmem>>, vector<128x128xbf16>
    %cst_16 = arith.constant dense<0.000000e+00> : vector<128x128xf32>
    %19 = tpu.matmul %17, %18, %cst_16 {dimension_numbers = #tpu.dot_dimension_numbers<[1], [0], [0], [1], [0, 0, 1, 1], [], []>} : vector<128x128xbf16>, vector<128x128xbf16>, vector<128x128xf32> -> vector<128x128xf32>
    %20 = vector.broadcast %3 : vector<1x128xf32> to vector<128x128xf32>
    %21 = arith.addf %19, %20 : vector<128x128xf32>
    %c0_17 = arith.constant 0 : index
    %c0_18 = arith.constant 0 : index
    %22 = vector.load %arg8[%c0_17, %c0_18] : memref<128x128xf32, #tpu.memory_space<vmem>>, vector<128x128xf32>
    tpu.vector_store %arg8[%c0_17, %c0_18], %21 {strides = array<i32>} : memref<128x128xf32, #tpu.memory_space<vmem>>, vector<128x128xf32>,
    return
  }
  func.func @transform_0(%arg0: i32) -> (i32, i32) {
    %c0_i32 = arith.constant 0 : i32
    %c0_i32_0 = arith.constant 0 : i32
    return %arg0, %c0_i32 : i32, i32
  }
  func.func @transform_1(%arg0: i32) -> (i32, i32) {
    %c0_i32 = arith.constant 0 : i32
    %c0_i32_0 = arith.constant 0 : i32
    %c0_i32_1 = arith.constant 0 : i32
    return %c0_i32, %c0_i32_0 : i32, i32
  }
  func.func @transform_2(%arg0: i32) -> (i32, i32) {
    %c0_i32 = arith.constant 0 : i32
    %c0_i32_0 = arith.constant 0 : i32
    %c0_i32_1 = arith.constant 0 : i32
    return %c0_i32, %c0_i32_0 : i32, i32
  }
  func.func @transform_3(%arg0: i32) -> (i32, i32) {
    %c0_i32 = arith.constant 0 : i32
    %c0_i32_0 = arith.constant 0 : i32
    %c0_i32_1 = arith.constant 0 : i32
    return %c0_i32, %c0_i32_0 : i32, i32
  }
  func.func @transform_4(%arg0: i32) -> (i32, i32) {
    %c0_i32 = arith.constant 0 : i32
    %c0_i32_0 = arith.constant 0 : i32
    %c0_i32_1 = arith.constant 0 : i32
    return %c0_i32, %c0_i32_0 : i32, i32
  }
  func.func @transform_5(%arg0: i32) -> (i32, i32) {
    %c0_i32 = arith.constant 0 : i32
    %c0_i32_0 = arith.constant 0 : i32
    %c0_i32_1 = arith.constant 0 : i32
    return %c0_i32, %c0_i32_0 : i32, i32
  }
  func.func @transform_6(%arg0: i32) -> (i32, i32) {
    %c0_i32 = arith.constant 0 : i32
    %c0_i32_0 = arith.constant 0 : i32
    %c0_i32_1 = arith.constant 0 : i32
    return %c0_i32, %c0_i32_0 : i32, i32
  }
  func.func @transform_7(%arg0: i32) -> (i32, i32) {
    %c0_i32 = arith.constant 0 : i32
    %c0_i32_0 = arith.constant 0 : i32
    return %arg0, %c0_i32 : i32, i32
  }
}

</mosaic_0001>

<llo_original>
// kernel: tpu_custom_call.1
$region0: #{tpu_custom_call.1}
  #allocation0 [shape = 'u32[]', space=smem, size = 0x4, offset = 0x4, fixed_abs, tag = 'smem constant byte address 0x4 - core index']
  #allocation1 [shape = 'u32[144,128]{1,0:T(1,128)}', space=vmem, size = 0x12000, scoped, tag = 'internal scratch']
  %s0 = inlined_call_operand.vmem [shape: bf16[128,32], index: 0, kind: input, shape index: {}]
  %s1 = inlined_call_operand.vmem [shape: bf16[32,128], index: 1, kind: input, shape index: {}]
  %s2 = inlined_call_operand.vmem [shape: f32[1,128], index: 2, kind: input, shape index: {}]
  %s3 = inlined_call_operand.vmem [shape: bf16[128,128], index: 3, kind: input, shape index: {}]
  %s4 = inlined_call_operand.vmem [shape: f32[1,128], index: 4, kind: input, shape index: {}]
  %s5 = inlined_call_operand.hbm [shape: bf16[128,128], index: 5, kind: input, shape index: {}]
  %s6 = inlined_call_operand.vmem [shape: f32[1,128], index: 6, kind: input, shape index: {}]
  %s7 = inlined_call_operand.hbm [shape: f32[128,128], index: 7, kind: output, shape index: {}]
  %s8 = sld [smem:[#allocation0]]
  $region42: #{tpu_custom_call.1} parent=0
    _
  %s10 = ssub.s32 1, %s8
  %s11 = scalar_select 0, %s10, %s8
  $region1: #{tpu_custom_call.1} parent=0
    #allocation2 [shape = 'u8[32768]{0}', space=vmem, size = 0x8000, scoped, tag = 'input window, operand 5, single buffered']
    #allocation3 [shape = 's32[1]{0}', space=sflag, size = 0x4, scoped, tag = 'scoped memory for tpu_custom_call.1']
    #allocation4 [shape = 's32[1]{0}', space=sflag, size = 0x4, scoped, tag = 'scoped memory for tpu_custom_call.1']
    #allocation5 [shape = 'u8[65536]{0}', space=vmem, size = 0x10000, scoped, tag = 'output window, operand 0, single buffered']
    %12 = vsyncpa [#allocation3], 0
    %13 = vsyncpa [#allocation4], 0
    // Predicated region
    $region2: #{tpu_custom_call.1} parent=1 // pred_check
      _
    $region3: #{tpu_custom_call.1} parent=1 // pred_check_branch
      %15 = sbr.rel (0) target = $region5
    $region4: #{tpu_custom_call.1} parent=1 // pred_region
      _
    $region5: #{tpu_custom_call.1} parent=1 // pred_fallthru
      _
    // Predicated region
    $region6: #{tpu_custom_call.1} parent=1 // pred_check
      _
    $region7: #{tpu_custom_call.1} parent=1 // pred_check_branch
      %17 = sbr.rel (0) target = $region9
    $region8: #{tpu_custom_call.1} parent=1 // pred_region
      _
    $region9: #{tpu_custom_call.1} parent=1 // pred_fallthru
      _
    // Predicated region
    $region10: #{tpu_custom_call.1} parent=1 // pred_check
      _
    $region11: #{tpu_custom_call.1} parent=1 // pred_check_branch
      %19 = sbr.rel (0) target = $region13
    $region12: #{tpu_custom_call.1} parent=1 // pred_region
      _
    $region13: #{tpu_custom_call.1} parent=1 // pred_fallthru
      _
    // Predicated region
    $region14: #{tpu_custom_call.1} parent=1 // pred_check
      _
    $region15: #{tpu_custom_call.1} parent=1 // pred_check_branch
      %21 = sbr.rel (0) target = $region17
    $region16: #{tpu_custom_call.1} parent=1 // pred_region
      _
    $region17: #{tpu_custom_call.1} parent=1 // pred_fallthru
      _
    // Predicated region
    $region18: #{tpu_custom_call.1} parent=1 // pred_check
      _
    $region19: #{tpu_custom_call.1} parent=1 // pred_check_branch
      %23 = sbr.rel (0) target = $region21
    $region20: #{tpu_custom_call.1} parent=1 // pred_region
      _
    $region21: #{tpu_custom_call.1} parent=1 // pred_fallthru
      _
    // Predicated region
    $region22: #{tpu_custom_call.1} parent=1 // pred_check
      _
    $region23: #{tpu_custom_call.1} parent=1 // pred_check_branch
      %25 = sbr.rel (0) target = $region25
    $region24: #{tpu_custom_call.1} parent=1 // pred_region
      %s27 = ssub.s32 1024, 1024
      %28 = vsyncadd [#allocation3], %s27
      %s29 = sshll.u32 [#allocation2], 4
      %s30 = int_to_ptr.vmem [resolvable:$true] %s29
      %35 = dma.hbm_to_vmem [thread:$0]  %s5, 1024, %s30, [#allocation3], 64, 64, 4
    $region25: #{tpu_custom_call.1} parent=1 // pred_fallthru
      _
    // Predicated region
    $region26: #{tpu_custom_call.1} parent=1 // pred_check
      _
    $region27: #{tpu_custom_call.1} parent=1 // pred_check_branch
      %37 = sbr.rel (0) target = $region29
    $region28: #{tpu_custom_call.1} parent=1 // pred_region
      _
    $region29: #{tpu_custom_call.1} parent=1 // pred_fallthru
      _
    // Predicated region
    $region30: #{tpu_custom_call.1} parent=1 // pred_check
      _
    $region31: #{tpu_custom_call.1} parent=1 // pred_check_branch
      %39 = sbr.rel (0) target = $region33
    $region32: #{tpu_custom_call.1} parent=1 // pred_region
      %40 = dma.done [#allocation3], 1024
    $region33: #{tpu_custom_call.1} parent=1 // pred_fallthru
      _
    %v42 = vld [vmem:[%s0] sm:$0xf]
    %v43 = vld [vmem:[%s0 + $0x4] sm:$0xf]
    %v44 = vld [vmem:[%s0 + $0x8] sm:$0xf]
    %v45 = vld [vmem:[%s0 + $0xc] sm:$0xf]
    %v46 = vld [vmem:[%s0 + $0x10] sm:$0xf]
    %v47 = vld [vmem:[%s0 + $0x14] sm:$0xf]
    %v48 = vld [vmem:[%s0 + $0x18] sm:$0xf]
    %v49 = vld [vmem:[%s0 + $0x1c] sm:$0xf]
    %v50 = vld [vmem:[%s0 + $0x20] sm:$0xf]
    %v51 = vld [vmem:[%s0 + $0x24] sm:$0xf]
    %v52 = vld [vmem:[%s0 + $0x28] sm:$0xf]
    %v53 = vld [vmem:[%s0 + $0x2c] sm:$0xf]
    %v54 = vld [vmem:[%s0 + $0x30] sm:$0xf]
    %v55 = vld [vmem:[%s0 + $0x34] sm:$0xf]
    %v56 = vld [vmem:[%s0 + $0x38] sm:$0xf]
    %v57 = vld [vmem:[%s0 + $0x3c] sm:$0xf]
    %v58 = vld [vmem:[%s2] sm:$0x1]
    %v59 = vld [vmem:[%s4] sm:$0x1]
    %v60 = vld [vmem:[%s6] sm:$0x1]
    %v61 = vld [vmem:[%s1] sm:$0xf]
    %v62 = vld [vmem:[%s1 + $0x4] sm:$0xf]
    %v63 = vld [vmem:[%s1 + $0x8] sm:$0xf]
    %v64 = vld [vmem:[%s1 + $0xc] sm:$0xf]
    %v66 = vlaneseq
    %v67 = vshrl.u32 %v66, 7
    %v68 = vsub.s32 0, %v67
    %v69 = vrot.slane %v58, %v68
    %v87 = vunpack.c.l.b16 %v42
    %v88 = vunpack.c.l.b16 %v43
    %v89 = vunpack.c.l.b16 %v44
    %v90 = vunpack.c.l.b16 %v45
    %v91 = vunpack.c.l.b16 %v46
    %v92 = vunpack.c.l.b16 %v47
    %v93 = vunpack.c.l.b16 %v48
    %v94 = vunpack.c.l.b16 %v49
    %v95 = vunpack.c.l.b16 %v50
    %v96 = vunpack.c.l.b16 %v51
    %v97 = vunpack.c.l.b16 %v52
    %v98 = vunpack.c.l.b16 %v53
    %v99 = vunpack.c.l.b16 %v54
    %v100 = vunpack.c.l.b16 %v55
    %v101 = vunpack.c.l.b16 %v56
    %v102 = vunpack.c.l.b16 %v57
    %v103 = vpack.c.b16 %v88, %v87
    %v104 = vpack.c.b16 %v90, %v89
    %v105 = vpack.c.b16 %v92, %v91
    %v106 = vpack.c.b16 %v94, %v93
    %v107 = vpack.c.b16 %v96, %v95
    %v108 = vpack.c.b16 %v98, %v97
    %v109 = vpack.c.b16 %v100, %v99
    %v110 = vpack.c.b16 %v102, %v101
    %v115 = vunpack.c.l.b16 %v61
    %v116 = vunpack.c.l.b16 %v62
    %v117 = vunpack.c.l.b16 %v63
    %v118 = vunpack.c.l.b16 %v64
    %v119 = vpack.c.b16 %v116, %v115
    %v120 = vpack.c.b16 %v118, %v117
    %vm123 = vcmask 261120
    %v125 = vsel %vm123, %v103, 0
    %v128 = vsel %vm123, %v104, 0
    %v131 = vsel %vm123, %v105, 0
    %v134 = vsel %vm123, %v106, 0
    %v137 = vsel %vm123, %v107, 0
    %v140 = vsel %vm123, %v108, 0
    %v143 = vsel %vm123, %v109, 0
    %v146 = vsel %vm123, %v110, 0
    %148 = vmatprep.subr.bf16.mxu0 0
    %149 = vmatpush1.bf16.msra.mxu0 0
    %150 = vmatprep.subr.bf16.mxu0 0
    %151 = vmatpush1.bf16.msra.mxu0 0
    %152 = vmatprep.subr.bf16.mxu0 0
    %153 = vmatpush1.bf16.msra.mxu0 0
    %154 = vmatprep.subr.bf16.mxu0 0
    %155 = vmatpush1.bf16.msra.mxu0 0
    %156 = vmatprep.subr.bf16.mxu0 0
    %157 = vmatpush1.bf16.msra.mxu0 0
    %158 = vmatprep.subr.bf16.mxu0 0
    %159 = vmatpush1.bf16.msra.mxu0 0
    %160 = vmatprep.subr.bf16.mxu0 0
    %161 = vmatpush1.bf16.msra.mxu0 %v120
    %162 = vmatprep.subr.bf16.mxu0 0
    %163 = vmatpush1.bf16.msra.mxu0 %v119
    %164 = vmatprep.subr.bf16.mxu0 0
    %165 = vmatpush2.bf16.msra.mxu0 0
    %166 = vmatprep.subr.bf16.mxu0 0
    %167 = vmatpush2.bf16.msra.mxu0 0
    %168 = vmatprep.subr.bf16.mxu0 0
    %169 = vmatpush2.bf16.msra.mxu0 0
    %170 = vmatprep.subr.bf16.mxu0 0
    %171 = vmatpush2.bf16.msra.mxu0 0
    %172 = vmatprep.subr.bf16.mxu0 0
    %173 = vmatpush2.bf16.msra.mxu0 0
    %174 = vmatprep.subr.bf16.mxu0 0
    %175 = vmatpush2.bf16.msra.mxu0 0
    %176 = vmatprep.subr.bf16.mxu0 0
    %177 = vmatpush2.bf16.msra.mxu0 0
    %178 = vmatprep.subr.bf16.mxu0 0
    %179 = vmatpush2.bf16.msra.mxu0 0
    %180 = vmatprep.mubr.bf16.mxu0 0
    %181 = vmatmul.mubr.bf16.gmra.mxu0 %v125
    %v182 = vpop.f32.mrf.mxu0
    %v183 = vadd.f32 %v69, %v182
    %v184 = vpop.f32.mrf.mxu0
    %v185 = vpop.f32.mrf.mxu0
    %v186 = vadd.f32 %v69, %v185
    %v187 = vpop.f32.mrf.mxu0
    %188 = vmatprep.mubr.bf16.mxu0 0
    %189 = vmatmul.mubr.bf16.gmra.mxu0 %v128
    %v190 = vpop.f32.mrf.mxu0
    %v191 = vadd.f32 %v69, %v190
    %v192 = vpop.f32.mrf.mxu0
    %v193 = vpop.f32.mrf.mxu0
    %v194 = vadd.f32 %v69, %v193
    %v195 = vpop.f32.mrf.mxu0
    %196 = vmatprep.mubr.bf16.mxu0 0
    %197 = vmatmul.mubr.bf16.gmra.mxu0 %v131
    %v198 = vpop.f32.mrf.mxu0
    %v199 = vadd.f32 %v69, %v198
    %v200 = vpop.f32.mrf.mxu0
    %v201 = vpop.f32.mrf.mxu0
    %v202 = vadd.f32 %v69, %v201
    %v203 = vpop.f32.mrf.mxu0
    %204 = vmatprep.mubr.bf16.mxu0 0
    %205 = vmatmul.mubr.bf16.gmra.mxu0 %v134
    %v206 = vpop.f32.mrf.mxu0
    %v207 = vadd.f32 %v69, %v206
    %v208 = vpop.f32.mrf.mxu0
    %v209 = vpop.f32.mrf.mxu0
    %v210 = vadd.f32 %v69, %v209
    %v211 = vpop.f32.mrf.mxu0
    %212 = vmatprep.mubr.bf16.mxu0 0
    %213 = vmatmul.mubr.bf16.gmra.mxu0 %v137
    %v214 = vpop.f32.mrf.mxu0
    %v215 = vadd.f32 %v69, %v214
    %v216 = vpop.f32.mrf.mxu0
    %v217 = vpop.f32.mrf.mxu0
    %v218 = vadd.f32 %v69, %v217
    %v219 = vpop.f32.mrf.mxu0
    %220 = vmatprep.mubr.bf16.mxu0 0
    %221 = vmatmul.mubr.bf16.gmra.mxu0 %v140
    %v222 = vpop.f32.mrf.mxu0
    %v223 = vadd.f32 %v69, %v222
    %v224 = vpop.f32.mrf.mxu0
    %v225 = vpop.f32.mrf.mxu0
    %v226 = vadd.f32 %v69, %v225
    %v227 = vpop.f32.mrf.mxu0
    %228 = vmatprep.mubr.bf16.mxu0 0
    %229 = vmatmul.mubr.bf16.gmra.mxu0 %v143
    %v230 = vpop.f32.mrf.mxu0
    %v231 = vadd.f32 %v69, %v230
    %v232 = vpop.f32.mrf.mxu0
    %v233 = vpop.f32.mrf.mxu0
    %v234 = vadd.f32 %v69, %v233
    %v235 = vpop.f32.mrf.mxu0
    %236 = vmatprep.mubr.bf16.mxu0 0
    %237 = vmatmul.mubr.bf16.gmra.mxu0 %v146
    %v238 = vpop.f32.mrf.mxu0
    %v239 = vadd.f32 %v69, %v238
    %v240 = vpop.f32.mrf.mxu0
    %v241 = vpop.f32.mrf.mxu0
    %v242 = vadd.f32 %v69, %v241
    %v243 = vpop.f32.mrf.mxu0
    %244 = vdwg.mxu0
    %v245 = vmax.f32 %v183, 0.0
    %v246 = vmax.f32 %v186, 0.0
    %v247 = vmax.f32 %v191, 0.0
    %v248 = vmax.f32 %v194, 0.0
    %v249 = vmax.f32 %v199, 0.0
    %v250 = vmax.f32 %v202, 0.0
    %v251 = vmax.f32 %v207, 0.0
    %v252 = vmax.f32 %v210, 0.0
    %v253 = vmax.f32 %v215, 0.0
    %v254 = vmax.f32 %v218, 0.0
    %v255 = vmax.f32 %v223, 0.0
    %v256 = vmax.f32 %v226, 0.0
    %v257 = vmax.f32 %v231, 0.0
    %v258 = vmax.f32 %v234, 0.0
    %v259 = vmax.f32 %v239, 0.0
    %v260 = vmax.f32 %v242, 0.0
    %v261 = vpack.c.bf16 %v246, %v245
    %v262 = vpack.c.bf16 %v248, %v247
    %v263 = vpack.c.bf16 %v250, %v249
    %v264 = vpack.c.bf16 %v252, %v251
    %v265 = vpack.c.bf16 %v254, %v253
    %v266 = vpack.c.bf16 %v256, %v255
    %v267 = vpack.c.bf16 %v258, %v257
    %v268 = vpack.c.bf16 %v260, %v259
    %v269 = vld [vmem:[%s3] sm:$0xf]
    %v270 = vld [vmem:[%s3 + $0x4] sm:$0xf]
    %v271 = vld [vmem:[%s3 + $0x8] sm:$0xf]
    %v272 = vld [vmem:[%s3 + $0xc] sm:$0xf]
    %v273 = vld [vmem:[%s3 + $0x10] sm:$0xf]
    %v274 = vld [vmem:[%s3 + $0x14] sm:$0xf]
    %v275 = vld [vmem:[%s3 + $0x18] sm:$0xf]
    %v276 = vld [vmem:[%s3 + $0x1c] sm:$0xf]
    %v277 = vld [vmem:[%s3 + $0x20] sm:$0xf]
    %v278 = vld [vmem:[%s3 + $0x24] sm:$0xf]
    %v279 = vld [vmem:[%s3 + $0x28] sm:$0xf]
    %v280 = vld [vmem:[%s3 + $0x2c] sm:$0xf]
    %v281 = vld [vmem:[%s3 + $0x30] sm:$0xf]
    %v282 = vld [vmem:[%s3 + $0x34] sm:$0xf]
    %v283 = vld [vmem:[%s3 + $0x38] sm:$0xf]
    %v284 = vld [vmem:[%s3 + $0x3c] sm:$0xf]
    %v286 = vlaneseq
    %v287 = vshrl.u32 %v286, 7
    %v288 = vsub.s32 0, %v287
    %v289 = vrot.slane %v59, %v288
    %v307 = vunpack.c.l.b16 %v269
    %v308 = vunpack.c.l.b16 %v270
    %v309 = vunpack.c.l.b16 %v271
    %v310 = vunpack.c.l.b16 %v272
    %v311 = vunpack.c.l.b16 %v273
    %v312 = vunpack.c.l.b16 %v274
    %v313 = vunpack.c.l.b16 %v275
    %v314 = vunpack.c.l.b16 %v276
    %v315 = vunpack.c.l.b16 %v277
    %v316 = vunpack.c.l.b16 %v278
    %v317 = vunpack.c.l.b16 %v279
    %v318 = vunpack.c.l.b16 %v280
    %v319 = vunpack.c.l.b16 %v281
    %v320 = vunpack.c.l.b16 %v282
    %v321 = vunpack.c.l.b16 %v283
    %v322 = vunpack.c.l.b16 %v284
    %v323 = vpack.c.b16 %v308, %v307
    %v324 = vpack.c.b16 %v310, %v309
    %v325 = vpack.c.b16 %v312, %v311
    %v326 = vpack.c.b16 %v314, %v313
    %v327 = vpack.c.b16 %v316, %v315
    %v328 = vpack.c.b16 %v318, %v317
    %v329 = vpack.c.b16 %v320, %v319
    %v330 = vpack.c.b16 %v322, %v321
    %339 = vmatprep.subr.bf16.mxu0 0
    %340 = vmatpush1.bf16.msra.mxu0 %v330
    %341 = vmatprep.subr.bf16.mxu0 0
    %342 = vmatpush1.bf16.msra.mxu0 %v329
    %343 = vmatprep.subr.bf16.mxu0 0
    %344 = vmatpush1.bf16.msra.mxu0 %v328
    %345 = vmatprep.subr.bf16.mxu0 0
    %346 = vmatpush1.bf16.msra.mxu0 %v327
    %347 = vmatprep.subr.bf16.mxu0 0
    %348 = vmatpush1.bf16.msra.mxu0 %v326
    %349 = vmatprep.subr.bf16.mxu0 0
    %350 = vmatpush1.bf16.msra.mxu0 %v325
    %351 = vmatprep.subr.bf16.mxu0 0
    %352 = vmatpush1.bf16.msra.mxu0 %v324
    %353 = vmatprep.subr.bf16.mxu0 0
    %354 = vmatpush1.bf16.msra.mxu0 %v323
    %355 = vmatprep.subr.bf16.mxu0 0
    %356 = vmatpush2.bf16.msra.mxu0 0
    %357 = vmatprep.subr.bf16.mxu0 0
    %358 = vmatpush2.bf16.msra.mxu0 0
    %359 = vmatprep.subr.bf16.mxu0 0
    %360 = vmatpush2.bf16.msra.mxu0 0
    %361 = vmatprep.subr.bf16.mxu0 0
    %362 = vmatpush2.bf16.msra.mxu0 0
    %363 = vmatprep.subr.bf16.mxu0 0
    %364 = vmatpush2.bf16.msra.mxu0 0
    %365 = vmatprep.subr.bf16.mxu0 0
    %366 = vmatpush2.bf16.msra.mxu0 0
    %367 = vmatprep.subr.bf16.mxu0 0
    %368 = vmatpush2.bf16.msra.mxu0 0
    %369 = vmatprep.subr.bf16.mxu0 0
    %370 = vmatpush2.bf16.msra.mxu0 0
    %371 = vmatprep.mubr.bf16.mxu0 0
    %372 = vmatmul.mubr.bf16.gmra.mxu0 %v261
    %v373 = vpop.f32.mrf.mxu0
    %v374 = vadd.f32 %v289, %v373
    %v375 = vpop.f32.mrf.mxu0
    %v376 = vpop.f32.mrf.mxu0
    %v377 = vadd.f32 %v289, %v376
    %v378 = vpop.f32.mrf.mxu0
    %379 = vmatprep.mubr.bf16.mxu0 0
    %380 = vmatmul.mubr.bf16.gmra.mxu0 %v262
    %v381 = vpop.f32.mrf.mxu0
    %v382 = vadd.f32 %v289, %v381
    %v383 = vpop.f32.mrf.mxu0
    %v384 = vpop.f32.mrf.mxu0
    %v385 = vadd.f32 %v289, %v384
    %v386 = vpop.f32.mrf.mxu0
    %387 = vmatprep.mubr.bf16.mxu0 0
    %388 = vmatmul.mubr.bf16.gmra.mxu0 %v263
    %v389 = vpop.f32.mrf.mxu0
    %v390 = vadd.f32 %v289, %v389
    %v391 = vpop.f32.mrf.mxu0
    %v392 = vpop.f32.mrf.mxu0
    %v393 = vadd.f32 %v289, %v392
    %v394 = vpop.f32.mrf.mxu0
    %395 = vmatprep.mubr.bf16.mxu0 0
    %396 = vmatmul.mubr.bf16.gmra.mxu0 %v264
    %v397 = vpop.f32.mrf.mxu0
    %v398 = vadd.f32 %v289, %v397
    %v399 = vpop.f32.mrf.mxu0
    %v400 = vpop.f32.mrf.mxu0
    %v401 = vadd.f32 %v289, %v400
    %v402 = vpop.f32.mrf.mxu0
    %403 = vmatprep.mubr.bf16.mxu0 0
    %404 = vmatmul.mubr.bf16.gmra.mxu0 %v265
    %v405 = vpop.f32.mrf.mxu0
    %v406 = vadd.f32 %v289, %v405
    %v407 = vpop.f32.mrf.mxu0
    %v408 = vpop.f32.mrf.mxu0
    %v409 = vadd.f32 %v289, %v408
    %v410 = vpop.f32.mrf.mxu0
    %411 = vmatprep.mubr.bf16.mxu0 0
    %412 = vmatmul.mubr.bf16.gmra.mxu0 %v266
    %v413 = vpop.f32.mrf.mxu0
    %v414 = vadd.f32 %v289, %v413
    %v415 = vpop.f32.mrf.mxu0
    %v416 = vpop.f32.mrf.mxu0
    %v417 = vadd.f32 %v289, %v416
    %v418 = vpop.f32.mrf.mxu0
    %419 = vmatprep.mubr.bf16.mxu0 0
    %420 = vmatmul.mubr.bf16.gmra.mxu0 %v267
    %v421 = vpop.f32.mrf.mxu0
    %v422 = vadd.f32 %v289, %v421
    %v423 = vpop.f32.mrf.mxu0
    %v424 = vpop.f32.mrf.mxu0
    %v425 = vadd.f32 %v289, %v424
    %v426 = vpop.f32.mrf.mxu0
    %427 = vmatprep.mubr.bf16.mxu0 0
    %428 = vmatmul.mubr.bf16.gmra.mxu0 %v268
    %v429 = vpop.f32.mrf.mxu0
    %v430 = vadd.f32 %v289, %v429
    %v431 = vpop.f32.mrf.mxu0
    %v432 = vpop.f32.mrf.mxu0
    %v433 = vadd.f32 %v289, %v432
    %v434 = vpop.f32.mrf.mxu0
    %435 = vdwg.mxu0
    %v436 = vmax.f32 %v374, 0.0
    %v437 = vmax.f32 %v377, 0.0
    %v438 = vmax.f32 %v382, 0.0
    %v439 = vmax.f32 %v385, 0.0
    %v440 = vmax.f32 %v390, 0.0
    %v441 = vmax.f32 %v393, 0.0
    %v442 = vmax.f32 %v398, 0.0
    %v443 = vmax.f32 %v401, 0.0
    %v444 = vmax.f32 %v406, 0.0
    %v445 = vmax.f32 %v409, 0.0
    %v446 = vmax.f32 %v414, 0.0
    %v447 = vmax.f32 %v417, 0.0
    %v448 = vmax.f32 %v422, 0.0
    %v449 = vmax.f32 %v425, 0.0
    %v450 = vmax.f32 %v430, 0.0
    %v451 = vmax.f32 %v433, 0.0
    %v452 = vpack.c.bf16 %v437, %v436
    %v453 = vpack.c.bf16 %v439, %v438
    %v454 = vpack.c.bf16 %v441, %v440
    %v455 = vpack.c.bf16 %v443, %v442
    %v456 = vpack.c.bf16 %v445, %v444
    %v457 = vpack.c.bf16 %v447, %v446
    %v458 = vpack.c.bf16 %v449, %v448
    %v459 = vpack.c.bf16 %v451, %v450
    %v460 = vld [vmem:[#allocation2] sm:$0xf]
    %v461 = vld [vmem:[#allocation2 + $0x4] sm:$0xf]
    %v462 = vld [vmem:[#allocation2 + $0x8] sm:$0xf]
    %v463 = vld [vmem:[#allocation2 + $0xc] sm:$0xf]
    %v464 = vld [vmem:[#allocation2 + $0x10] sm:$0xf]
    %v465 = vld [vmem:[#allocation2 + $0x14] sm:$0xf]
    %v466 = vld [vmem:[#allocation2 + $0x18] sm:$0xf]
    %v467 = vld [vmem:[#allocation2 + $0x1c] sm:$0xf]
    %v468 = vld [vmem:[#allocation2 + $0x20] sm:$0xf]
    %v469 = vld [vmem:[#allocation2 + $0x24] sm:$0xf]
    %v470 = vld [vmem:[#allocation2 + $0x28] sm:$0xf]
    %v471 = vld [vmem:[#allocation2 + $0x2c] sm:$0xf]
    %v472 = vld [vmem:[#allocation2 + $0x30] sm:$0xf]
    %v473 = vld [vmem:[#allocation2 + $0x34] sm:$0xf]
    %v474 = vld [vmem:[#allocation2 + $0x38] sm:$0xf]
    %v475 = vld [vmem:[#allocation2 + $0x3c] sm:$0xf]
    %v477 = vlaneseq
    %v478 = vshrl.u32 %v477, 7
    %v479 = vsub.s32 0, %v478
    %v480 = vrot.slane %v60, %v479
    %v498 = vunpack.c.l.b16 %v460
    %v499 = vunpack.c.l.b16 %v461
    %v500 = vunpack.c.l.b16 %v462
    %v501 = vunpack.c.l.b16 %v463
    %v502 = vunpack.c.l.b16 %v464
    %v503 = vunpack.c.l.b16 %v465
    %v504 = vunpack.c.l.b16 %v466
    %v505 = vunpack.c.l.b16 %v467
    %v506 = vunpack.c.l.b16 %v468
    %v507 = vunpack.c.l.b16 %v469
    %v508 = vunpack.c.l.b16 %v470
    %v509 = vunpack.c.l.b16 %v471
    %v510 = vunpack.c.l.b16 %v472
    %v511 = vunpack.c.l.b16 %v473
    %v512 = vunpack.c.l.b16 %v474
    %v513 = vunpack.c.l.b16 %v475
    %v514 = vpack.c.b16 %v499, %v498
    %v515 = vpack.c.b16 %v501, %v500
    %v516 = vpack.c.b16 %v503, %v502
    %v517 = vpack.c.b16 %v505, %v504
    %v518 = vpack.c.b16 %v507, %v506
    %v519 = vpack.c.b16 %v509, %v508
    %v520 = vpack.c.b16 %v511, %v510
    %v521 = vpack.c.b16 %v513, %v512
    %530 = vmatprep.subr.bf16.mxu0 0
    %531 = vmatpush1.bf16.msra.mxu0 %v521
    %532 = vmatprep.subr.bf16.mxu0 0
    %533 = vmatpush1.bf16.msra.mxu0 %v520
    %534 = vmatprep.subr.bf16.mxu0 0
    %535 = vmatpush1.bf16.msra.mxu0 %v519
    %536 = vmatprep.subr.bf16.mxu0 0
    %537 = vmatpush1.bf16.msra.mxu0 %v518
    %538 = vmatprep.subr.bf16.mxu0 0
    %539 = vmatpush1.bf16.msra.mxu0 %v517
    %540 = vmatprep.subr.bf16.mxu0 0
    %541 = vmatpush1.bf16.msra.mxu0 %v516
    %542 = vmatprep.subr.bf16.mxu0 0
    %543 = vmatpush1.bf16.msra.mxu0 %v515
    %544 = vmatprep.subr.bf16.mxu0 0
    %545 = vmatpush1.bf16.msra.mxu0 %v514
    %546 = vmatprep.subr.bf16.mxu0 0
    %547 = vmatpush2.bf16.msra.mxu0 0
    %548 = vmatprep.subr.bf16.mxu0 0
    %549 = vmatpush2.bf16.msra.mxu0 0
    %550 = vmatprep.subr.bf16.mxu0 0
    %551 = vmatpush2.bf16.msra.mxu0 0
    %552 = vmatprep.subr.bf16.mxu0 0
    %553 = vmatpush2.bf16.msra.mxu0 0
    %554 = vmatprep.subr.bf16.mxu0 0
    %555 = vmatpush2.bf16.msra.mxu0 0
    %556 = vmatprep.subr.bf16.mxu0 0
    %557 = vmatpush2.bf16.msra.mxu0 0
    %558 = vmatprep.subr.bf16.mxu0 0
    %559 = vmatpush2.bf16.msra.mxu0 0
    %560 = vmatprep.subr.bf16.mxu0 0
    %561 = vmatpush2.bf16.msra.mxu0 0
    %562 = vmatprep.mubr.bf16.mxu0 0
    %563 = vmatmul.mubr.bf16.gmra.mxu0 %v452
    %v564 = vpop.f32.mrf.mxu0
    %v565 = vadd.f32 %v480, %v564
    %v566 = vpop.f32.mrf.mxu0
    %v567 = vpop.f32.mrf.mxu0
    %v568 = vadd.f32 %v480, %v567
    %v569 = vpop.f32.mrf.mxu0
    %570 = vmatprep.mubr.bf16.mxu0 0
    %571 = vmatmul.mubr.bf16.gmra.mxu0 %v453
    %v572 = vpop.f32.mrf.mxu0
    %v573 = vadd.f32 %v480, %v572
    %v574 = vpop.f32.mrf.mxu0
    %v575 = vpop.f32.mrf.mxu0
    %v576 = vadd.f32 %v480, %v575
    %v577 = vpop.f32.mrf.mxu0
    %578 = vmatprep.mubr.bf16.mxu0 0
    %579 = vmatmul.mubr.bf16.gmra.mxu0 %v454
    %v580 = vpop.f32.mrf.mxu0
    %v581 = vadd.f32 %v480, %v580
    %v582 = vpop.f32.mrf.mxu0
    %v583 = vpop.f32.mrf.mxu0
    %v584 = vadd.f32 %v480, %v583
    %v585 = vpop.f32.mrf.mxu0
    %586 = vmatprep.mubr.bf16.mxu0 0
    %587 = vmatmul.mubr.bf16.gmra.mxu0 %v455
    %v588 = vpop.f32.mrf.mxu0
    %v589 = vadd.f32 %v480, %v588
    %v590 = vpop.f32.mrf.mxu0
    %v591 = vpop.f32.mrf.mxu0
    %v592 = vadd.f32 %v480, %v591
    %v593 = vpop.f32.mrf.mxu0
    %594 = vmatprep.mubr.bf16.mxu0 0
    %595 = vmatmul.mubr.bf16.gmra.mxu0 %v456
    %v596 = vpop.f32.mrf.mxu0
    %v597 = vadd.f32 %v480, %v596
    %v598 = vpop.f32.mrf.mxu0
    %v599 = vpop.f32.mrf.mxu0
    %v600 = vadd.f32 %v480, %v599
    %v601 = vpop.f32.mrf.mxu0
    %602 = vmatprep.mubr.bf16.mxu0 0
    %603 = vmatmul.mubr.bf16.gmra.mxu0 %v457
    %v604 = vpop.f32.mrf.mxu0
    %v605 = vadd.f32 %v480, %v604
    %v606 = vpop.f32.mrf.mxu0
    %v607 = vpop.f32.mrf.mxu0
    %v608 = vadd.f32 %v480, %v607
    %v609 = vpop.f32.mrf.mxu0
    %610 = vmatprep.mubr.bf16.mxu0 0
    %611 = vmatmul.mubr.bf16.gmra.mxu0 %v458
    %v612 = vpop.f32.mrf.mxu0
    %v613 = vadd.f32 %v480, %v612
    %v614 = vpop.f32.mrf.mxu0
    %v615 = vpop.f32.mrf.mxu0
    %v616 = vadd.f32 %v480, %v615
    %v617 = vpop.f32.mrf.mxu0
    %618 = vmatprep.mubr.bf16.mxu0 0
    %619 = vmatmul.mubr.bf16.gmra.mxu0 %v459
    %v620 = vpop.f32.mrf.mxu0
    %v621 = vadd.f32 %v480, %v620
    %v622 = vpop.f32.mrf.mxu0
    %v623 = vpop.f32.mrf.mxu0
    %v624 = vadd.f32 %v480, %v623
    %v625 = vpop.f32.mrf.mxu0
    %626 = vdwg.mxu0
    %627 = vst [vmem:[#allocation5] sm:$0xff] %v565
    %628 = vst [vmem:[#allocation5 + $0x8] sm:$0xff] %v568
    %629 = vst [vmem:[#allocation5 + $0x10] sm:$0xff] %v573
    %630 = vst [vmem:[#allocation5 + $0x18] sm:$0xff] %v576
    %631 = vst [vmem:[#allocation5 + $0x20] sm:$0xff] %v581
    %632 = vst [vmem:[#allocation5 + $0x28] sm:$0xff] %v584
    %633 = vst [vmem:[#allocation5 + $0x30] sm:$0xff] %v589
    %634 = vst [vmem:[#allocation5 + $0x38] sm:$0xff] %v592
    %635 = vst [vmem:[#allocation5 + $0x40] sm:$0xff] %v597
    %636 = vst [vmem:[#allocation5 + $0x48] sm:$0xff] %v600
    %637 = vst [vmem:[#allocation5 + $0x50] sm:$0xff] %v605
    %638 = vst [vmem:[#allocation5 + $0x58] sm:$0xff] %v608
    %639 = vst [vmem:[#allocation5 + $0x60] sm:$0xff] %v613
    %640 = vst [vmem:[#allocation5 + $0x68] sm:$0xff] %v616
    %641 = vst [vmem:[#allocation5 + $0x70] sm:$0xff] %v621
    %642 = vst [vmem:[#allocation5 + $0x78] sm:$0xff] %v624
    // Predicated region
    $region34: #{tpu_custom_call.1} parent=1 // pred_check
      _
    $region35: #{tpu_custom_call.1} parent=1 // pred_check_branch
      %644 = sbr.rel (0) target = $region37
    $region36: #{tpu_custom_call.1} parent=1 // pred_region
      %s646 = ssub.s32 2048, 2048
      %647 = vsyncadd [#allocation4], %s646
      %s648 = sshll.u32 [#allocation5], 4
      %s649 = int_to_ptr.vmem [resolvable:$true] %s648
      %654 = dma.vmem_to_hbm [thread:$0]  %s649, 2048, %s7, [#allocation4], 128, 128, 8
    $region37: #{tpu_custom_call.1} parent=1 // pred_fallthru
      _
    // Predicated region
    $region38: #{tpu_custom_call.1} parent=1 // pred_check
      _
    $region39: #{tpu_custom_call.1} parent=1 // pred_check_branch
      %656 = sbr.rel (0) target = $region41
    $region40: #{tpu_custom_call.1} parent=1 // pred_region
      %657 = dma.done [#allocation4], 2048
    $region41: #{tpu_custom_call.1} parent=1 // pred_fallthru
      _
    %658 = vsyncpa [#allocation3], 1
    %659 = vsyncpa [#allocation4], 1

</llo_original>
